<compile_context>
chip_gen: v7x
topology: tpu7x:2x2x1
jax: 0.10.0
libtpu: 0.0.40
codegen_flags: <defaults>
</compile_context>

<pallas_src>
import functools

import jax
import jax.numpy as jnp
from jax.experimental import pallas as pl
from jax.experimental.pallas import tpu as pltpu


def _round_up(x: int, m: int) -> int:
    return ((x + m - 1) // m) * m


# Conservative VMEM budgets (bytes) so the tiling fits the *default* scoped
# VMEM limit on every generation (16 MiB v5e, 32 MiB v6e/v7x) with
# double-buffering headroom.
_W_BLOCK_BUDGET = 4 * 1024 * 1024   # widest resident weight block (bf16 bytes)
_XO_BLOCK_BUDGET = 6 * 1024 * 1024  # double-buffered x + out blocks


def _plan_weight_tiles(K: int, N: int):
    """Choose padded (Kp, Np) and the N tile width tn for the weight."""
    Kp = _round_up(K, 128)
    Np = _round_up(N, 128)
    if Kp * Np * 2 <= _W_BLOCK_BUDGET:
        return Kp, Np, Np            # whole (padded) weight resident in VMEM
    tn = 1024
    while tn > 128 and Kp * tn * 2 > _W_BLOCK_BUDGET:
        tn //= 2
    Np = _round_up(N, tn)
    return Kp, Np, tn


def prep_linear_weights(weight, bias):
    """One-time prep: PyTorch-layout W (N,K) -> bf16 (Kp,Np) + f32 bias + tn."""
    N, K = weight.shape
    Kp, Np, tn = _plan_weight_tiles(K, N)
    w_kn = jnp.asarray(weight).T.astype(jnp.bfloat16)     # (K, N)
    w_kn = jnp.pad(w_kn, ((0, Kp - K), (0, Np - N)))       # zero pad is exact
    return w_kn, jnp.asarray(bias, jnp.float32), tn


def _linear_bias_kernel(x_ref, w_ref, b_ref, o_ref):
    """One (tm, tn) output tile in a single MXU pass over the full K."""
    acc = jnp.dot(x_ref[...], w_ref[...], preferred_element_type=jnp.float32)
    o_ref[...] = (acc + b_ref[...]).astype(o_ref.dtype)


@functools.partial(jax.jit, static_argnames=("tn",))
def _linear_pallas(x2d, w_kn, bias, *, tn):
    """x2d: (M, K), w_kn: padded bf16 (Kp, Np), bias: (N,) -> (M, N)."""
    M, K = x2d.shape
    Kp, Np = w_kn.shape
    N = bias.shape[0]
    out_dtype = x2d.dtype
    out_bytes = jnp.dtype(out_dtype).itemsize

    # --- row tiling: big tiles, bf16 sublane multiple (16), VMEM-bounded ---
    tm = 512
    while tm > 16 and 2 * tm * (Kp * 2 + tn * out_bytes) > _XO_BLOCK_BUDGET:
        tm //= 2
    rows16 = _round_up(max(M, 1), 16)
    if Np == tn and 16 < rows16 <= tm:
        # Single column tile: split rows so v7x's two TensorCores both get work.
        tm = _round_up(pl.cdiv(rows16, 2), 16)
    tm = min(tm, rows16)
    Mp = _round_up(M, tm)

    # --- pad & cast activations (fused under jit; no-op when already aligned) ---
    x = x2d.astype(jnp.bfloat16)
    if (Mp, Kp) != (M, K):
        x = jnp.pad(x, ((0, Mp - M), (0, Kp - K)))
    b = bias.reshape(1, N)
    if Np != N:
        b = jnp.pad(b, ((0, 0), (0, Np - N)))

    grid = (Mp // tm, Np // tn)

    cost = pl.CostEstimate(
        flops=2 * M * N * K,
        bytes_accessed=(M * K + K * N) * 2 + N * 4 + M * N * out_bytes,
        transcendentals=0,
    )

    out = pl.pallas_call(
        _linear_bias_kernel,
        out_shape=jax.ShapeDtypeStruct((Mp, Np), out_dtype),
        grid=grid,
        in_specs=[
            pl.BlockSpec((tm, Kp), lambda i, j: (i, 0)),   # x rows, full K
            pl.BlockSpec((Kp, tn), lambda i, j: (0, j)),   # W resident when tn==Np
            pl.BlockSpec((1, tn), lambda i, j: (0, j)),    # bias slice
        ],
        out_specs=pl.BlockSpec((tm, tn), lambda i, j: (i, j)),
        compiler_params=pltpu.CompilerParams(
            dimension_semantics=("parallel", "parallel"),
        ),
        cost_estimate=cost,
    )(x, w_kn, b)

    if (Mp, Np) != (M, N):
        out = out[:M, :N]
    return out


def linear_adapter_forward(ASR_output, w_kn_prepped, bias_f32, *, tn):
    """y = ASR_output @ W.T + b, with W already prepped to padded bf16 (Kp, Np)."""
    *lead, K = ASR_output.shape
    N = bias_f32.shape[0]
    M = 1
    for d in lead:
        M *= d
    x2d = ASR_output.reshape(M, K)
    out2d = _linear_pallas(x2d, w_kn_prepped, bias_f32, tn=tn)
    return out2d.reshape(*lead, N)


class LinearAdapterPallas:
    """JAX/Pallas mirror of fairseq LinearAdapter (y = Linear(ASR_output))."""

    def __init__(self, ASR_dim, MT_dim, key=None, dtype=jnp.float32):
        if key is None:
            key = jax.random.PRNGKey(0)
        kw, kb = jax.random.split(key)
        # Match nn.Linear default init: U(-1/sqrt(in), 1/sqrt(in)).
        bound = 1.0 / (ASR_dim ** 0.5)
        self.weight = jax.random.uniform(
            kw, (MT_dim, ASR_dim), dtype=dtype, minval=-bound, maxval=bound
        )
        self.bias = jax.random.uniform(
            kb, (MT_dim,), dtype=dtype, minval=-bound, maxval=bound
        )
        # One-time weight preprocessing (transpose, pad, bf16) hoisted out of forward.
        self._w_kn, self._bias_f32, self._tn = prep_linear_weights(
            self.weight, self.bias
        )

    def forward(self, ASR_output, **kwargs):
        return linear_adapter_forward(
            ASR_output, self._w_kn, self._bias_f32, tn=self._tn
        )

    __call__ = forward

    def init(self, state_dict):
        # TODO(synk): reference init() is an empty stub; no state loading done.
        pass

    def share(self, module):
        # Share parameters (and prepped weight) with another adapter.
        self.weight = module.weight
        self.bias = module.bias
        self._w_kn = module._w_kn
        self._bias_f32 = module._bias_f32
        self._tn = module._tn


if __name__ == "__main__":
    key = jax.random.PRNGKey(0)
    k_x, k_mod, k_x2 = jax.random.split(key, 3)

    # (seq, batch, ASR_dim) fairseq encoder-out layout; small deterministic test.
    T, B, ASR_dim, MT_dim = 8, 2, 32, 64
    ASR_output = jax.random.normal(k_x, (T, B, ASR_dim), dtype=jnp.float32)

    adapter = LinearAdapterPallas(ASR_dim, MT_dim, key=k_mod)

    y = adapter.forward(ASR_output)
    jax.block_until_ready(y)
    assert y.shape == (T, B, MT_dim)

    # Strict check vs. a reference using the same bf16-fed / f32-accumulate path.
    x2d = ASR_output.reshape(-1, ASR_dim).astype(jnp.bfloat16)
    w_kn = adapter.weight.T.astype(jnp.bfloat16)
    ref_bf16 = (
        jnp.dot(x2d, w_kn, preferred_element_type=jnp.float32) + adapter.bias
    ).reshape(T, B, MT_dim)
    assert bool(jnp.allclose(y, ref_bf16, atol=1e-3, rtol=1e-3)), "bf16-path mismatch"

    # Loose check vs. the pure-f32 PyTorch semantics (x @ W.T + b).
    ref_f32 = jnp.einsum("tbk,nk->tbn", ASR_output, adapter.weight) + adapter.bias
    assert bool(jnp.allclose(y, ref_f32, atol=3e-2, rtol=3e-2)), "f32 ref mismatch"

    # Second case with unaligned M / K / N to exercise the pad + slice paths.
    adapter2 = LinearAdapterPallas(40, 96, key=k_mod)
    x2 = jax.random.normal(k_x2, (7, 3, 40), dtype=jnp.float32)
    y2 = adapter2(x2)
    jax.block_until_ready(y2)
    ref2 = jnp.einsum("tbk,nk->tbn", x2, adapter2.weight) + adapter2.bias
    assert y2.shape == (7, 3, 96)
    assert bool(jnp.allclose(y2, ref2, atol=3e-2, rtol=3e-2)), "unaligned mismatch"

    print("KERNEL_OK")
</pallas_src>

<mosaic_0001>
module attributes {stable_mosaic.version = 11 : i64} {
  func.func @_linear_bias_kernel(%arg0: i32, %arg1: i32, %arg2: memref<16x128xbf16, #tpu.memory_space<vmem>>, %arg3: memref<128x128xbf16, #tpu.memory_space<vmem>>, %arg4: memref<1x128xf32, #tpu.memory_space<vmem>>, %arg5: memref<16x128xf32, #tpu.memory_space<vmem>>) attributes {dimension_semantics = [#tpu.dimension_semantics<parallel>, #tpu.dimension_semantics<parallel>], iteration_bounds = array<i64: 1, 1>, scalar_prefetch = 0 : i64, scratch_operands = 0 : i64, tpu.core_type = #tpu.core_type<tc>, window_params = [{transform_indices = @transform_0, window_bounds = array<i64: 16, 128>}, {transform_indices = @transform_1, window_bounds = array<i64: 128, 128>}, {transform_indices = @transform_2, window_bounds = array<i64: 1, 128>}, {transform_indices = @transform_3, window_bounds = array<i64: 16, 128>}]} {
    %c0 = arith.constant 0 : index
    %c0_0 = arith.constant 0 : index
    %0 = vector.load %arg2[%c0, %c0_0] : memref<16x128xbf16, #tpu.memory_space<vmem>>, vector<16x128xbf16>
    %c0_1 = arith.constant 0 : index
    %c0_2 = arith.constant 0 : index
    %1 = vector.load %arg3[%c0_1, %c0_2] : memref<128x128xbf16, #tpu.memory_space<vmem>>, vector<128x128xbf16>
    %cst = arith.constant dense<0.000000e+00> : vector<16x128xf32>
    %2 = tpu.matmul %0, %1, %cst {dimension_numbers = #tpu.dot_dimension_numbers<[1], [0], [0], [1], [0, 0, 1, 1], [], []>} : vector<16x128xbf16>, vector<128x128xbf16>, vector<16x128xf32> -> vector<16x128xf32>
    %c0_3 = arith.constant 0 : index
    %c0_4 = arith.constant 0 : index
    %3 = vector.load %arg4[%c0_3, %c0_4] : memref<1x128xf32, #tpu.memory_space<vmem>>, vector<1x128xf32>
    %4 = vector.broadcast %3 : vector<1x128xf32> to vector<16x128xf32>
    %5 = arith.addf %2, %4 : vector<16x128xf32>
    %c0_5 = arith.constant 0 : index
    %c0_6 = arith.constant 0 : index
    %6 = vector.load %arg5[%c0_5, %c0_6] : memref<16x128xf32, #tpu.memory_space<vmem>>, vector<16x128xf32>
    tpu.vector_store %arg5[%c0_5, %c0_6], %5 {strides = array<i32>} : memref<16x128xf32, #tpu.memory_space<vmem>>, vector<16x128xf32>,
    return
  }
  func.func @transform_0(%arg0: i32, %arg1: i32) -> (i32, i32) {
    %c0_i32 = arith.constant 0 : i32
    %c0_i32_0 = arith.constant 0 : i32
    return %arg0, %c0_i32 : i32, i32
  }
  func.func @transform_1(%arg0: i32, %arg1: i32) -> (i32, i32) {
    %c0_i32 = arith.constant 0 : i32
    %c0_i32_0 = arith.constant 0 : i32
    return %c0_i32, %arg1 : i32, i32
  }
  func.func @transform_2(%arg0: i32, %arg1: i32) -> (i32, i32) {
    %c0_i32 = arith.constant 0 : i32
    %c0_i32_0 = arith.constant 0 : i32
    return %c0_i32, %arg1 : i32, i32
  }
  func.func @transform_3(%arg0: i32, %arg1: i32) -> (i32, i32) {
    %c0_i32 = arith.constant 0 : i32
    return %arg0, %arg1 : i32, i32
  }
}

</mosaic_0001>

<llo_original>
// kernel: _linear_pallas.1
$region0: #{_linear_pallas.1}
  #allocation0 [shape = 'u32[]', space=smem, size = 0x4, offset = 0x4, fixed_abs, tag = 'smem constant byte address 0x4 - core index']
  #allocation1 [shape = 'u32[144,128]{1,0:T(1,128)}', space=vmem, size = 0x12000, scoped, tag = 'internal scratch']
  %s0 = inlined_call_operand.vmem [shape: bf16[16,128], index: 0, kind: input, shape index: {}]
  %s1 = inlined_call_operand.hbm [shape: bf16[128,128], index: 1, kind: input, shape index: {}]
  %s2 = inlined_call_operand.vmem [shape: f32[1,128], index: 2, kind: input, shape index: {}]
  %s3 = inlined_call_operand.hbm [shape: f32[16,128], index: 3, kind: output, shape index: {}]
  %s4 = sld [smem:[#allocation0]]
  $region26: #{_linear_pallas.1} parent=0
    _
  %s6 = ssub.s32 1, %s4
  %s7 = scalar_select 0, %s6, %s4
  $region1: #{_linear_pallas.1} parent=0
    #allocation2 [shape = 'u8[32768]{0}', space=vmem, size = 0x8000, scoped, tag = 'input window, operand 1, single buffered']
    #allocation3 [shape = 's32[1]{0}', space=sflag, size = 0x4, scoped, tag = 'scoped memory for _linear_pallas.1']
    #allocation4 [shape = 's32[1]{0}', space=sflag, size = 0x4, scoped, tag = 'scoped memory for _linear_pallas.1']
    #allocation5 [shape = 'u8[8192]{0}', space=vmem, size = 0x2000, scoped, tag = 'output window, operand 0, single buffered']
    %8 = vsyncpa [#allocation3], 0
    %9 = vsyncpa [#allocation4], 0
    // Predicated region
    $region2: #{_linear_pallas.1} parent=1 // pred_check
      _
    $region3: #{_linear_pallas.1} parent=1 // pred_check_branch
      %11 = sbr.rel (0) target = $region5
    $region4: #{_linear_pallas.1} parent=1 // pred_region
      _
    $region5: #{_linear_pallas.1} parent=1 // pred_fallthru
      _
    // Predicated region
    $region6: #{_linear_pallas.1} parent=1 // pred_check
      _
    $region7: #{_linear_pallas.1} parent=1 // pred_check_branch
      %13 = sbr.rel (0) target = $region9
    $region8: #{_linear_pallas.1} parent=1 // pred_region
      %s15 = ssub.s32 1024, 1024
      %16 = vsyncadd [#allocation3], %s15
      %s17 = sshll.u32 [#allocation2], 4
      %s18 = int_to_ptr.vmem [resolvable:$true] %s17
      %23 = dma.hbm_to_vmem [thread:$0]  %s1, 1024, %s18, [#allocation3], 64, 64, 4
    $region9: #{_linear_pallas.1} parent=1 // pred_fallthru
      _
    // Predicated region
    $region10: #{_linear_pallas.1} parent=1 // pred_check
      _
    $region11: #{_linear_pallas.1} parent=1 // pred_check_branch
      %25 = sbr.rel (0) target = $region13
    $region12: #{_linear_pallas.1} parent=1 // pred_region
      _
    $region13: #{_linear_pallas.1} parent=1 // pred_fallthru
      _
    // Predicated region
    $region14: #{_linear_pallas.1} parent=1 // pred_check
      _
    $region15: #{_linear_pallas.1} parent=1 // pred_check_branch
      %27 = sbr.rel (0) target = $region17
    $region16: #{_linear_pallas.1} parent=1 // pred_region
      %28 = dma.done [#allocation3], 1024
    $region17: #{_linear_pallas.1} parent=1 // pred_fallthru
      _
    %v30 = vld [vmem:[%s0] sm:$0xf]
    %v31 = vld [vmem:[%s0 + $0x4] sm:$0xf]
    %v32 = vld [vmem:[#allocation2] sm:$0xf]
    %v33 = vld [vmem:[#allocation2 + $0x4] sm:$0xf]
    %v34 = vld [vmem:[#allocation2 + $0x8] sm:$0xf]
    %v35 = vld [vmem:[#allocation2 + $0xc] sm:$0xf]
    %v36 = vld [vmem:[#allocation2 + $0x10] sm:$0xf]
    %v37 = vld [vmem:[#allocation2 + $0x14] sm:$0xf]
    %v38 = vld [vmem:[#allocation2 + $0x18] sm:$0xf]
    %v39 = vld [vmem:[#allocation2 + $0x1c] sm:$0xf]
    %v40 = vld [vmem:[#allocation2 + $0x20] sm:$0xf]
    %v41 = vld [vmem:[#allocation2 + $0x24] sm:$0xf]
    %v42 = vld [vmem:[#allocation2 + $0x28] sm:$0xf]
    %v43 = vld [vmem:[#allocation2 + $0x2c] sm:$0xf]
    %v44 = vld [vmem:[#allocation2 + $0x30] sm:$0xf]
    %v45 = vld [vmem:[#allocation2 + $0x34] sm:$0xf]
    %v46 = vld [vmem:[#allocation2 + $0x38] sm:$0xf]
    %v47 = vld [vmem:[#allocation2 + $0x3c] sm:$0xf]
    %v48 = vld [vmem:[%s2] sm:$0x1]
    %v50 = vlaneseq
    %v51 = vshrl.u32 %v50, 7
    %v52 = vsub.s32 0, %v51
    %v53 = vrot.slane %v48, %v52
    %v57 = vunpack.c.l.b16 %v30
    %v58 = vunpack.c.l.b16 %v31
    %v59 = vpack.c.b16 %v58, %v57
    %v77 = vunpack.c.l.b16 %v32
    %v78 = vunpack.c.l.b16 %v33
    %v79 = vunpack.c.l.b16 %v34
    %v80 = vunpack.c.l.b16 %v35
    %v81 = vunpack.c.l.b16 %v36
    %v82 = vunpack.c.l.b16 %v37
    %v83 = vunpack.c.l.b16 %v38
    %v84 = vunpack.c.l.b16 %v39
    %v85 = vunpack.c.l.b16 %v40
    %v86 = vunpack.c.l.b16 %v41
    %v87 = vunpack.c.l.b16 %v42
    %v88 = vunpack.c.l.b16 %v43
    %v89 = vunpack.c.l.b16 %v44
    %v90 = vunpack.c.l.b16 %v45
    %v91 = vunpack.c.l.b16 %v46
    %v92 = vunpack.c.l.b16 %v47
    %v93 = vpack.c.b16 %v78, %v77
    %v94 = vpack.c.b16 %v80, %v79
    %v95 = vpack.c.b16 %v82, %v81
    %v96 = vpack.c.b16 %v84, %v83
    %v97 = vpack.c.b16 %v86, %v85
    %v98 = vpack.c.b16 %v88, %v87
    %v99 = vpack.c.b16 %v90, %v89
    %v100 = vpack.c.b16 %v92, %v91
    %109 = vmatprep.subr.bf16.mxu0 0
    %110 = vmatpush1.bf16.msra.mxu0 %v93
    %111 = vmatprep.subr.bf16.mxu0 0
    %112 = vmatpush1.bf16.msra.mxu0 %v94
    %113 = vmatprep.subr.bf16.mxu0 0
    %114 = vmatpush1.bf16.msra.mxu0 %v95
    %115 = vmatprep.subr.bf16.mxu0 0
    %116 = vmatpush1.bf16.msra.mxu0 %v96
    %117 = vmatprep.subr.bf16.mxu0 0
    %118 = vmatpush1.bf16.msra.mxu0 %v97
    %119 = vmatprep.subr.bf16.mxu0 0
    %120 = vmatpush1.bf16.msra.mxu0 %v98
    %121 = vmatprep.subr.bf16.mxu0 0
    %122 = vmatpush1.bf16.msra.mxu0 %v99
    %123 = vmatprep.subr.bf16.mxu0 0
    %124 = vmatpush1.bf16.msra.mxu0 %v100
    %125 = vmatprep.subr.bf16.mxu0 0
    %126 = vmatpush1.bf16.msra.mxu0 0
    %127 = vmatprep.subr.bf16.mxu0 0
    %128 = vmatpush1.bf16.msra.mxu0 0
    %129 = vmatprep.subr.bf16.mxu0 0
    %130 = vmatpush1.bf16.msra.mxu0 0
    %131 = vmatprep.subr.bf16.mxu0 0
    %132 = vmatpush1.bf16.msra.mxu0 0
    %133 = vmatprep.subr.bf16.mxu0 0
    %134 = vmatpush1.bf16.msra.mxu0 0
    %135 = vmatprep.subr.bf16.mxu0 0
    %136 = vmatpush1.bf16.msra.mxu0 0
    %137 = vmatprep.subr.bf16.mxu0 0
    %138 = vmatpush1.bf16.msra.mxu0 0
    %139 = vmatprep.subr.bf16.mxu0 0
    %140 = vmatpush1.bf16.msra.mxu0 0
    %141 = vmatprep.mubr.bf16.mxu0 0
    %142 = vmatmul.mubr.bf16.gmra.mrb[0].mxu0 %v59
    %v143 = vpop.f32.mrb[0].mxu0
    %v144 = vadd.f32 %v53, %v143
    %v145 = vpop.f32.mrb[0].mxu0
    %v146 = vpop.f32.mrb[0].mxu0
    %v147 = vadd.f32 %v53, %v146
    %v148 = vpop.f32.mrb[0].mxu0
    %149 = vdwg.mxu0
    %150 = vst [vmem:[#allocation5] sm:$0xff] %v144
    %151 = vst [vmem:[#allocation5 + $0x8] sm:$0xff] %v147
    // Predicated region
    $region18: #{_linear_pallas.1} parent=1 // pred_check
      _
    $region19: #{_linear_pallas.1} parent=1 // pred_check_branch
      %153 = sbr.rel (0) target = $region21
    $region20: #{_linear_pallas.1} parent=1 // pred_region
      %s155 = ssub.s32 256, 256
      %156 = vsyncadd [#allocation4], %s155
      %s157 = sshll.u32 [#allocation5], 4
      %s158 = int_to_ptr.vmem [resolvable:$true] %s157
      %163 = dma.vmem_to_hbm [thread:$0]  %s158, 256, %s3, [#allocation4], 128, 128, 8
    $region21: #{_linear_pallas.1} parent=1 // pred_fallthru
      _
    // Predicated region
    $region22: #{_linear_pallas.1} parent=1 // pred_check
      _
    $region23: #{_linear_pallas.1} parent=1 // pred_check_branch
      %165 = sbr.rel (0) target = $region25
    $region24: #{_linear_pallas.1} parent=1 // pred_region
      %166 = dma.done [#allocation4], 256
    $region25: #{_linear_pallas.1} parent=1 // pred_fallthru
      _
    %167 = vsyncpa [#allocation3], 1
    %168 = vsyncpa [#allocation4], 1

</llo_original>
